<compile_context>
chip_gen: v7x
topology: tpu7x:2x2x1
jax: 0.10.0
libtpu: 0.0.40
codegen_flags: <defaults>
</compile_context>

<pallas_src>
import jax
import jax.numpy as jnp
from jax import lax
from jax.experimental import pallas as pl
from jax.experimental.pallas import tpu as pltpu


# ---------------------------------------------------------------------------
# Config (mirrors BaselineConfig defaults)
# ---------------------------------------------------------------------------
INPUT_DIM = 5
HIDDEN_DIM = 64
OUTPUT_DIM = 1
SEQ_LEN = 20

INPUT_SIZE = INPUT_DIM * SEQ_LEN                             # 100
HIDDEN_DIMS = [HIDDEN_DIM * 2, HIDDEN_DIM, HIDDEN_DIM // 2]  # [128, 64, 32]

# Max rows per grid step.  4096 keeps double-buffered f32 x tiles plus f32
# layer intermediates well inside v5e's scoped VMEM while amortizing the
# ~0.35 us per-grid-step overhead.
TILE_B_MAX = 4096


# ---------------------------------------------------------------------------
# Pallas kernel: fused 4-layer MLP over one batch tile, lane-dense output
# ---------------------------------------------------------------------------
def mlp_kernel(x_ref,
               w1_ref, b1_ref,
               w2_ref, b2_ref,
               w3_ref, b3_ref,
               w4_ref, b4_ref,
               o_ref):
    # In-kernel bf16 cast (VPU slack; avoids an extra HBM pass in the wrapper).
    x = x_ref[...].astype(jnp.bfloat16)

    # Layer 1: [tile_b,100]bf16 @ [100,128]bf16 -> f32 acc, + bias, ReLU
    h = jnp.dot(x, w1_ref[...], preferred_element_type=jnp.float32)
    h = jnp.maximum(h + b1_ref[...], 0.0)
    # Layer 2: 128 -> 64
    h = jnp.dot(h.astype(jnp.bfloat16), w2_ref[...],
                preferred_element_type=jnp.float32)
    h = jnp.maximum(h + b2_ref[...], 0.0)
    # Layer 3: 64 -> 32
    h = jnp.dot(h.astype(jnp.bfloat16), w3_ref[...],
                preferred_element_type=jnp.float32)
    h = jnp.maximum(h + b3_ref[...], 0.0)

    # Output layer 32 -> 1, produced lane-dense as [1, tile_b]:
    #   y = w4_pad @ h^T  (contract last dims of both operands, f32).
    # w4_pad is [8, 32] with rows 1..7 zero so the MXU gets a sublane-aligned M.
    y = lax.dot_general(w4_ref[...], h,
                        dimension_numbers=(((1,), (1,)), ((), ())),
                        preferred_element_type=jnp.float32)        # [8, tile_b]
    o_ref[...] = (y[0:1, :] + b4_ref[...]).astype(o_ref.dtype)     # [1, tile_b]


# ---------------------------------------------------------------------------
# Wrapper
# ---------------------------------------------------------------------------
def _round_up(x, m):
    return (x + m - 1) // m * m


def _choose_tile_b(batch):
    """Batch tile: big enough to amortize per-step overhead, small enough to
    keep ~4 grid steps (v7x megacore sharding) and fit v5e scoped VMEM."""
    if batch < 16:
        return batch                           # single block == full dim (legal)
    return min(TILE_B_MAX, _round_up(pl.cdiv(batch, 4), 16))


def mlp_baseline_forward(x, params):
    """x: [batch, seq_len, input_dim] or [batch, input_dim] -> [batch, OUTPUT_DIM] f32."""
    if x.ndim == 2:
        x = x[:, None, :]                      # unsqueeze(1)
    x = x.reshape(x.shape[0], -1)              # flatten(1) -> [B, seq_len*input_dim]
    batch, feat = x.shape

    (w1, b1), (w2, b2), (w3, b3), (w4, b4) = params

    # bf16 weights for the MXU (one-time tiny cast; f32 accumulation in-kernel).
    w1_bf = w1.astype(jnp.bfloat16)
    w2_bf = w2.astype(jnp.bfloat16)
    w3_bf = w3.astype(jnp.bfloat16)
    # Final-layer weight as an 8-row, sublane-aligned, zero-padded row block.
    w4_pad = jnp.zeros((8, w4.shape[0]), jnp.float32).at[0, :].set(w4[:, 0])

    tile_b = _choose_tile_b(batch)
    num_tiles = pl.cdiv(batch, tile_b)
    rows = num_tiles * tile_b

    def const_spec(shape):
        # Constant block index -> params stay VMEM-resident across grid steps.
        return pl.BlockSpec(shape, lambda i: (0, 0))

    flops_per_row = 2 * (feat * HIDDEN_DIMS[0]
                         + HIDDEN_DIMS[0] * HIDDEN_DIMS[1]
                         + HIDDEN_DIMS[1] * HIDDEN_DIMS[2]
                         + HIDDEN_DIMS[2] * OUTPUT_DIM)
    param_bytes = (w1_bf.size + w2_bf.size + w3_bf.size) * 2 \
        + (w4_pad.size + b1.size + b2.size + b3.size + b4.size) * 4
    cost = pl.CostEstimate(
        flops=int(flops_per_row * rows),
        transcendentals=0,
        bytes_accessed=int(rows * feat * 4 + rows * 4 + param_bytes),
    )

    out2d = pl.pallas_call(
        mlp_kernel,
        out_shape=jax.ShapeDtypeStruct((num_tiles, tile_b), jnp.float32),
        grid=(num_tiles,),
        in_specs=[
            # x: tiled over batch.  (Add pipeline_mode=pl.Buffered(3) here only
            # if a profile shows exposed x DMA; default double-buffering is
            # enough at these tile sizes.)
            pl.BlockSpec((tile_b, feat), lambda i: (i, 0)),
            const_spec(w1_bf.shape), const_spec(b1.shape),
            const_spec(w2_bf.shape), const_spec(b2.shape),
            const_spec(w3_bf.shape), const_spec(b3.shape),
            const_spec(w4_pad.shape), const_spec(b4.shape),
        ],
        out_specs=pl.BlockSpec((1, tile_b), lambda i: (i, 0)),
        compiler_params=pltpu.CompilerParams(
            dimension_semantics=("parallel",),      # megacore on v7x
            vmem_limit_bytes=32 * 1024 * 1024,      # raises v5e's 16 MiB default
        ),
        cost_estimate=cost,
    )(x, w1_bf, b1, w2_bf, b2, w3_bf, b3, w4_pad, b4)

    # [num_tiles, tile_b] lane-dense slab -> [batch, 1]; ragged-tail rows dropped.
    return out2d.reshape(num_tiles * tile_b)[:batch].reshape(batch, OUTPUT_DIM)


# ---------------------------------------------------------------------------
# Deterministic parameter init (shapes match nn.Linear layers of MLPBaseline)
# Weights stored as [in, out]; biases as [1, out] for clean broadcasting.
# ---------------------------------------------------------------------------
def init_params(key):
    dims = [INPUT_SIZE] + HIDDEN_DIMS + [OUTPUT_DIM]   # [100, 128, 64, 32, 1]
    params = []
    for din, dout in zip(dims[:-1], dims[1:]):
        kw, kb, key = jax.random.split(key, 3)
        bound = 1.0 / jnp.sqrt(din)                    # torch nn.Linear-style uniform bound
        w = jax.random.uniform(kw, (din, dout), jnp.float32, -bound, bound)
        b = jax.random.uniform(kb, (1, dout), jnp.float32, -bound, bound)
        params.append((w, b))
    return params


# ---------------------------------------------------------------------------
# Pure-JAX reference (same bf16/f32-acc numerics as the kernel)
# ---------------------------------------------------------------------------
def mlp_ref(x, params):
    if x.ndim == 2:
        x = x[:, None, :]
    h = x.reshape(x.shape[0], -1)
    (w1, b1), (w2, b2), (w3, b3), (w4, b4) = params

    def layer(h, w, b):
        y = jnp.dot(h.astype(jnp.bfloat16), w.astype(jnp.bfloat16),
                    preferred_element_type=jnp.float32) + b
        return jnp.maximum(y, 0.0)

    h = layer(h, w1, b1)
    h = layer(h, w2, b2)
    h = layer(h, w3, b3)
    return h @ w4 + b4                                   # final layer in f32


if __name__ == "__main__":
    key = jax.random.PRNGKey(0)
    kx1, kx2, kp = jax.random.split(key, 3)
    params = init_params(kp)

    # Small batch: single grid step, block == full batch dim.
    x_small = jax.random.normal(kx1, (8, SEQ_LEN, INPUT_DIM), jnp.float32)
    out_small = jax.block_until_ready(mlp_baseline_forward(x_small, params))
    ref_small = mlp_ref(x_small, params)
    assert out_small.shape == (8, OUTPUT_DIM), out_small.shape
    assert jnp.allclose(out_small, ref_small, atol=2e-2, rtol=2e-2), "small-batch mismatch"

    # Larger batch, non-multiple of tile: exercises multi-step grid + ragged last block.
    x_large = jax.random.normal(kx2, (300, SEQ_LEN, INPUT_DIM), jnp.float32)
    out_large = jax.block_until_ready(mlp_baseline_forward(x_large, params))
    ref_large = mlp_ref(x_large, params)
    assert out_large.shape == (300, OUTPUT_DIM), out_large.shape
    assert jnp.allclose(out_large, ref_large, atol=2e-2, rtol=2e-2), "tiled-batch mismatch"

    print("KERNEL_OK")
</pallas_src>

<mosaic_0001>
module attributes {stable_mosaic.version = 11 : i64} {
  func.func @mlp_kernel(%arg0: i32, %arg1: memref<8x100xf32, #tpu.memory_space<vmem>>, %arg2: memref<100x128xbf16, #tpu.memory_space<vmem>>, %arg3: memref<1x128xf32, #tpu.memory_space<vmem>>, %arg4: memref<128x64xbf16, #tpu.memory_space<vmem>>, %arg5: memref<1x64xf32, #tpu.memory_space<vmem>>, %arg6: memref<64x32xbf16, #tpu.memory_space<vmem>>, %arg7: memref<1x32xf32, #tpu.memory_space<vmem>>, %arg8: memref<8x32xf32, #tpu.memory_space<vmem>>, %arg9: memref<1x1xf32, #tpu.memory_space<vmem>>, %arg10: memref<1x8xf32, #tpu.memory_space<vmem>>) attributes {dimension_semantics = [#tpu.dimension_semantics<parallel>], iteration_bounds = array<i64: 1>, scalar_prefetch = 0 : i64, scratch_operands = 0 : i64, tpu.core_type = #tpu.core_type<tc>, window_params = [{transform_indices = @transform_0, window_bounds = array<i64: 8, 100>}, {pipeline_mode = #tpu.pipeline_mode<synchronous>, transform_indices = @transform_1, window_bounds = array<i64: 100, 128>}, {pipeline_mode = #tpu.pipeline_mode<synchronous>, transform_indices = @transform_2, window_bounds = array<i64: 1, 128>}, {pipeline_mode = #tpu.pipeline_mode<synchronous>, transform_indices = @transform_3, window_bounds = array<i64: 128, 64>}, {pipeline_mode = #tpu.pipeline_mode<synchronous>, transform_indices = @transform_4, window_bounds = array<i64: 1, 64>}, {pipeline_mode = #tpu.pipeline_mode<synchronous>, transform_indices = @transform_5, window_bounds = array<i64: 64, 32>}, {pipeline_mode = #tpu.pipeline_mode<synchronous>, transform_indices = @transform_6, window_bounds = array<i64: 1, 32>}, {pipeline_mode = #tpu.pipeline_mode<synchronous>, transform_indices = @transform_7, window_bounds = array<i64: 8, 32>}, {pipeline_mode = #tpu.pipeline_mode<synchronous>, transform_indices = @transform_8, window_bounds = array<i64: 1, 1>}, {transform_indices = @transform_9, window_bounds = array<i64: 1, 8>}]} {
    %c0 = arith.constant 0 : index
    %c0_0 = arith.constant 0 : index
    %0 = vector.load %arg1[%c0, %c0_0] : memref<8x100xf32, #tpu.memory_space<vmem>>, vector<8x100xf32>
    %1 = arith.truncf %0 : vector<8x100xf32> to vector<8x100xbf16>
    %c0_1 = arith.constant 0 : index
    %c0_2 = arith.constant 0 : index
    %2 = vector.load %arg2[%c0_1, %c0_2] : memref<100x128xbf16, #tpu.memory_space<vmem>>, vector<100x128xbf16>
    %cst = arith.constant dense<0.000000e+00> : vector<8x128xf32>
    %3 = tpu.matmul %1, %2, %cst {dimension_numbers = #tpu.dot_dimension_numbers<[1], [0], [0], [1], [0, 0, 1, 1], [], []>} : vector<8x100xbf16>, vector<100x128xbf16>, vector<8x128xf32> -> vector<8x128xf32>
    %c0_3 = arith.constant 0 : index
    %c0_4 = arith.constant 0 : index
    %4 = vector.load %arg3[%c0_3, %c0_4] : memref<1x128xf32, #tpu.memory_space<vmem>>, vector<1x128xf32>
    %5 = vector.broadcast %4 : vector<1x128xf32> to vector<8x128xf32>
    %6 = arith.addf %3, %5 : vector<8x128xf32>
    %cst_5 = arith.constant 0.000000e+00 : f32
    %7 = vector.broadcast %cst_5 : f32 to vector<8x128xf32>
    %8 = arith.maximumf %6, %7 : vector<8x128xf32>
    %9 = arith.truncf %8 : vector<8x128xf32> to vector<8x128xbf16>
    %c0_6 = arith.constant 0 : index
    %c0_7 = arith.constant 0 : index
    %10 = vector.load %arg4[%c0_6, %c0_7] : memref<128x64xbf16, #tpu.memory_space<vmem>>, vector<128x64xbf16>
    %cst_8 = arith.constant dense<0.000000e+00> : vector<8x64xf32>
    %11 = tpu.matmul %9, %10, %cst_8 {dimension_numbers = #tpu.dot_dimension_numbers<[1], [0], [0], [1], [0, 0, 1, 1], [], []>} : vector<8x128xbf16>, vector<128x64xbf16>, vector<8x64xf32> -> vector<8x64xf32>
    %c0_9 = arith.constant 0 : index
    %c0_10 = arith.constant 0 : index
    %12 = vector.load %arg5[%c0_9, %c0_10] : memref<1x64xf32, #tpu.memory_space<vmem>>, vector<1x64xf32>
    %13 = vector.broadcast %12 : vector<1x64xf32> to vector<8x64xf32>
    %14 = arith.addf %11, %13 : vector<8x64xf32>
    %cst_11 = arith.constant 0.000000e+00 : f32
    %15 = vector.broadcast %cst_11 : f32 to vector<8x64xf32>
    %16 = arith.maximumf %14, %15 : vector<8x64xf32>
    %17 = arith.truncf %16 : vector<8x64xf32> to vector<8x64xbf16>
    %c0_12 = arith.constant 0 : index
    %c0_13 = arith.constant 0 : index
    %18 = vector.load %arg6[%c0_12, %c0_13] : memref<64x32xbf16, #tpu.memory_space<vmem>>, vector<64x32xbf16>
    %cst_14 = arith.constant dense<0.000000e+00> : vector<8x32xf32>
    %19 = tpu.matmul %17, %18, %cst_14 {dimension_numbers = #tpu.dot_dimension_numbers<[1], [0], [0], [1], [0, 0, 1, 1], [], []>} : vector<8x64xbf16>, vector<64x32xbf16>, vector<8x32xf32> -> vector<8x32xf32>
    %c0_15 = arith.constant 0 : index
    %c0_16 = arith.constant 0 : index
    %20 = vector.load %arg7[%c0_15, %c0_16] : memref<1x32xf32, #tpu.memory_space<vmem>>, vector<1x32xf32>
    %21 = vector.broadcast %20 : vector<1x32xf32> to vector<8x32xf32>
    %22 = arith.addf %19, %21 : vector<8x32xf32>
    %cst_17 = arith.constant 0.000000e+00 : f32
    %23 = vector.broadcast %cst_17 : f32 to vector<8x32xf32>
    %24 = arith.maximumf %22, %23 : vector<8x32xf32>
    %c0_18 = arith.constant 0 : index
    %c0_19 = arith.constant 0 : index
    %25 = vector.load %arg8[%c0_18, %c0_19] : memref<8x32xf32, #tpu.memory_space<vmem>>, vector<8x32xf32>
    %cst_20 = arith.constant dense<0.000000e+00> : vector<8x8xf32>
    %26 = tpu.matmul %25, %24, %cst_20 {dimension_numbers = #tpu.dot_dimension_numbers<[1], [1], [0], [0], [0, 0, 1, 0], [], []>} : vector<8x32xf32>, vector<8x32xf32>, vector<8x8xf32> -> vector<8x8xf32>
    %27 = vector.extract_strided_slice %26 {offsets = [0, 0], sizes = [1, 8], strides = [1, 1]} : vector<8x8xf32> to vector<1x8xf32>
    %c0_21 = arith.constant 0 : index
    %c0_22 = arith.constant 0 : index
    %28 = vector.load %arg9[%c0_21, %c0_22] : memref<1x1xf32, #tpu.memory_space<vmem>>, vector<1x1xf32>
    %29 = vector.broadcast %28 : vector<1x1xf32> to vector<1x8xf32>
    %30 = arith.addf %27, %29 : vector<1x8xf32>
    %c0_23 = arith.constant 0 : index
    %c0_24 = arith.constant 0 : index
    %31 = vector.load %arg10[%c0_23, %c0_24] : memref<1x8xf32, #tpu.memory_space<vmem>>, vector<1x8xf32>
    tpu.vector_store %arg10[%c0_23, %c0_24], %30 {strides = array<i32>} : memref<1x8xf32, #tpu.memory_space<vmem>>, vector<1x8xf32>,
    return
  }
  func.func @transform_0(%arg0: i32) -> (i32, i32) {
    %c0_i32 = arith.constant 0 : i32
    %c0_i32_0 = arith.constant 0 : i32
    return %arg0, %c0_i32 : i32, i32
  }
  func.func @transform_1(%arg0: i32) -> (i32, i32) {
    %c0_i32 = arith.constant 0 : i32
    %c0_i32_0 = arith.constant 0 : i32
    %c0_i32_1 = arith.constant 0 : i32
    return %c0_i32, %c0_i32_0 : i32, i32
  }
  func.func @transform_2(%arg0: i32) -> (i32, i32) {
    %c0_i32 = arith.constant 0 : i32
    %c0_i32_0 = arith.constant 0 : i32
    %c0_i32_1 = arith.constant 0 : i32
    return %c0_i32, %c0_i32_0 : i32, i32
  }
  func.func @transform_3(%arg0: i32) -> (i32, i32) {
    %c0_i32 = arith.constant 0 : i32
    %c0_i32_0 = arith.constant 0 : i32
    %c0_i32_1 = arith.constant 0 : i32
    return %c0_i32, %c0_i32_0 : i32, i32
  }
  func.func @transform_4(%arg0: i32) -> (i32, i32) {
    %c0_i32 = arith.constant 0 : i32
    %c0_i32_0 = arith.constant 0 : i32
    %c0_i32_1 = arith.constant 0 : i32
    return %c0_i32, %c0_i32_0 : i32, i32
  }
  func.func @transform_5(%arg0: i32) -> (i32, i32) {
    %c0_i32 = arith.constant 0 : i32
    %c0_i32_0 = arith.constant 0 : i32
    %c0_i32_1 = arith.constant 0 : i32
    return %c0_i32, %c0_i32_0 : i32, i32
  }
  func.func @transform_6(%arg0: i32) -> (i32, i32) {
    %c0_i32 = arith.constant 0 : i32
    %c0_i32_0 = arith.constant 0 : i32
    %c0_i32_1 = arith.constant 0 : i32
    return %c0_i32, %c0_i32_0 : i32, i32
  }
  func.func @transform_7(%arg0: i32) -> (i32, i32) {
    %c0_i32 = arith.constant 0 : i32
    %c0_i32_0 = arith.constant 0 : i32
    %c0_i32_1 = arith.constant 0 : i32
    return %c0_i32, %c0_i32_0 : i32, i32
  }
  func.func @transform_8(%arg0: i32) -> (i32, i32) {
    %c0_i32 = arith.constant 0 : i32
    %c0_i32_0 = arith.constant 0 : i32
    %c0_i32_1 = arith.constant 0 : i32
    return %c0_i32, %c0_i32_0 : i32, i32
  }
  func.func @transform_9(%arg0: i32) -> (i32, i32) {
    %c0_i32 = arith.constant 0 : i32
    %c0_i32_0 = arith.constant 0 : i32
    return %arg0, %c0_i32 : i32, i32
  }
}

</mosaic_0001>

<llo_original>
// kernel: tpu_custom_call.1
$region0: #{tpu_custom_call.1}
  #allocation0 [shape = 'u32[]', space=smem, size = 0x4, offset = 0x4, fixed_abs, tag = 'smem constant byte address 0x4 - core index']
  #allocation1 [shape = 'u32[144,128]{1,0:T(1,128)}', space=vmem, size = 0x12000, scoped, tag = 'internal scratch']
  #allocation2 [shape = 'f32[1,1]{1,0:T(1,128)S(1)}', space=vmem, size = 0x200, scoped, tag = 'scoped memory for tpu_custom_call.1']
  %s0 = inlined_call_operand.vmem [shape: f32[8,100], index: 0, kind: input, shape index: {}]
  %s1 = inlined_call_operand.vmem [shape: bf16[100,128], index: 1, kind: input, shape index: {}]
  %s2 = inlined_call_operand.vmem [shape: f32[1,128], index: 2, kind: input, shape index: {}]
  %s3 = inlined_call_operand.vmem [shape: bf16[128,64], index: 3, kind: input, shape index: {}]
  %s4 = inlined_call_operand.vmem [shape: f32[1,64], index: 4, kind: input, shape index: {}]
  %s5 = inlined_call_operand.vmem [shape: bf16[64,32], index: 5, kind: input, shape index: {}]
  %s6 = inlined_call_operand.vmem [shape: f32[1,32], index: 6, kind: input, shape index: {}]
  %s7 = inlined_call_operand.vmem [shape: f32[8,32], index: 7, kind: input, shape index: {}]
  %s8 = inlined_call_operand.<no memory space> [shape: f32[1,1], index: 8, kind: input, shape index: {}]
  %s9 = inlined_call_operand.hbm [shape: f32[1,8], index: 9, kind: output, shape index: {}]
  %s10 = sld [smem:[#allocation0]]
  $region46: #{tpu_custom_call.1} parent=0
    _
  %s12 = ssub.s32 1, %s10
  %s13 = scalar_select 0, %s12, %s10
  %v14 = vstv %s8
  %15 = vst [vmem:[#allocation2] sm:$0x1] %v14
  $region1: #{tpu_custom_call.1} parent=0
    #allocation3 [shape = 'u8[512]{0}', space=vmem, size = 0x400, scoped, tag = 'output window, operand 0, single buffered']
    #allocation4 [shape = 's32[1]{0}', space=sflag, size = 0x4, scoped, tag = 'scoped memory for tpu_custom_call.1']
    %16 = vsyncpa [#allocation4], 0
    // Predicated region
    $region2: #{tpu_custom_call.1} parent=1 // pred_check
      _
    $region3: #{tpu_custom_call.1} parent=1 // pred_check_branch
      %18 = sbr.rel (0) target = $region5
    $region4: #{tpu_custom_call.1} parent=1 // pred_region
      _
    $region5: #{tpu_custom_call.1} parent=1 // pred_fallthru
      _
    // Predicated region
    $region6: #{tpu_custom_call.1} parent=1 // pred_check
      _
    $region7: #{tpu_custom_call.1} parent=1 // pred_check_branch
      %20 = sbr.rel (0) target = $region9
    $region8: #{tpu_custom_call.1} parent=1 // pred_region
      _
    $region9: #{tpu_custom_call.1} parent=1 // pred_fallthru
      _
    // Predicated region
    $region10: #{tpu_custom_call.1} parent=1 // pred_check
      _
    $region11: #{tpu_custom_call.1} parent=1 // pred_check_branch
      %22 = sbr.rel (0) target = $region13
    $region12: #{tpu_custom_call.1} parent=1 // pred_region
      _
    $region13: #{tpu_custom_call.1} parent=1 // pred_fallthru
      _
    // Predicated region
    $region14: #{tpu_custom_call.1} parent=1 // pred_check
      _
    $region15: #{tpu_custom_call.1} parent=1 // pred_check_branch
      %24 = sbr.rel (0) target = $region17
    $region16: #{tpu_custom_call.1} parent=1 // pred_region
      _
    $region17: #{tpu_custom_call.1} parent=1 // pred_fallthru
      _
    // Predicated region
    $region18: #{tpu_custom_call.1} parent=1 // pred_check
      _
    $region19: #{tpu_custom_call.1} parent=1 // pred_check_branch
      %26 = sbr.rel (0) target = $region21
    $region20: #{tpu_custom_call.1} parent=1 // pred_region
      _
    $region21: #{tpu_custom_call.1} parent=1 // pred_fallthru
      _
    // Predicated region
    $region22: #{tpu_custom_call.1} parent=1 // pred_check
      _
    $region23: #{tpu_custom_call.1} parent=1 // pred_check_branch
      %28 = sbr.rel (0) target = $region25
    $region24: #{tpu_custom_call.1} parent=1 // pred_region
      _
    $region25: #{tpu_custom_call.1} parent=1 // pred_fallthru
      _
    // Predicated region
    $region26: #{tpu_custom_call.1} parent=1 // pred_check
      _
    $region27: #{tpu_custom_call.1} parent=1 // pred_check_branch
      %30 = sbr.rel (0) target = $region29
    $region28: #{tpu_custom_call.1} parent=1 // pred_region
      _
    $region29: #{tpu_custom_call.1} parent=1 // pred_fallthru
      _
    // Predicated region
    $region30: #{tpu_custom_call.1} parent=1 // pred_check
      _
    $region31: #{tpu_custom_call.1} parent=1 // pred_check_branch
      %32 = sbr.rel (0) target = $region33
    $region32: #{tpu_custom_call.1} parent=1 // pred_region
      _
    $region33: #{tpu_custom_call.1} parent=1 // pred_fallthru
      _
    // Predicated region
    $region34: #{tpu_custom_call.1} parent=1 // pred_check
      _
    $region35: #{tpu_custom_call.1} parent=1 // pred_check_branch
      %34 = sbr.rel (0) target = $region37
    $region36: #{tpu_custom_call.1} parent=1 // pred_region
      _
    $region37: #{tpu_custom_call.1} parent=1 // pred_fallthru
      _
    %v36 = vld [vmem:[%s0] sm:$0xff]
    %v37 = vpack.c.bf16 %v36, %v36
    %v38 = vld [vmem:[%s1] sm:$0xf]
    %v39 = vld [vmem:[%s1 + $0x4] sm:$0xf]
    %v40 = vld [vmem:[%s1 + $0x8] sm:$0xf]
    %v41 = vld [vmem:[%s1 + $0xc] sm:$0xf]
    %v42 = vld [vmem:[%s1 + $0x10] sm:$0xf]
    %v43 = vld [vmem:[%s1 + $0x14] sm:$0xf]
    %v44 = vld [vmem:[%s1 + $0x18] sm:$0xf]
    %v45 = vld [vmem:[%s1 + $0x1c] sm:$0xf]
    %v46 = vld [vmem:[%s1 + $0x20] sm:$0xf]
    %v47 = vld [vmem:[%s1 + $0x24] sm:$0xf]
    %v48 = vld [vmem:[%s1 + $0x28] sm:$0xf]
    %v49 = vld [vmem:[%s1 + $0x2c] sm:$0xf]
    %v50 = vld [vmem:[%s1 + $0x30] sm:$0x3]
    %v51 = vld [vmem:[%s2] sm:$0x1]
    %v53 = vlaneseq
    %v54 = vshrl.u32 %v53, 7
    %v55 = vsub.s32 0, %v54
    %v56 = vrot.slane %v51, %v55
    %v71 = vunpack.c.l.b16 %v38
    %v72 = vunpack.c.l.b16 %v39
    %v73 = vunpack.c.l.b16 %v40
    %v74 = vunpack.c.l.b16 %v41
    %v75 = vunpack.c.l.b16 %v42
    %v76 = vunpack.c.l.b16 %v43
    %v77 = vunpack.c.l.b16 %v44
    %v78 = vunpack.c.l.b16 %v45
    %v79 = vunpack.c.l.b16 %v46
    %v80 = vunpack.c.l.b16 %v47
    %v81 = vunpack.c.l.b16 %v48
    %v82 = vunpack.c.l.b16 %v49
    %v83 = vunpack.c.l.b16 %v50
    %v84 = vpack.c.b16 %v72, %v71
    %v85 = vpack.c.b16 %v74, %v73
    %v86 = vpack.c.b16 %v76, %v75
    %v87 = vpack.c.b16 %v78, %v77
    %v88 = vpack.c.b16 %v80, %v79
    %v89 = vpack.c.b16 %v82, %v81
    %v90 = vpack.c.b16 %v83, %v83
    %vm97 = vcmask 818176
    %v99 = vsel %vm97, %v37, 0
    %vm101 = vcmask 1041408
    %v103 = vsel %vm101, %v90, 0
    %105 = vmatprep.subr.bf16.mxu0 0
    %106 = vmatpush1.bf16.msra.mxu0 %v84
    %107 = vmatprep.subr.bf16.mxu0 0
    %108 = vmatpush1.bf16.msra.mxu0 %v85
    %109 = vmatprep.subr.bf16.mxu0 0
    %110 = vmatpush1.bf16.msra.mxu0 %v86
    %111 = vmatprep.subr.bf16.mxu0 0
    %112 = vmatpush1.bf16.msra.mxu0 %v87
    %113 = vmatprep.subr.bf16.mxu0 0
    %114 = vmatpush1.bf16.msra.mxu0 %v88
    %115 = vmatprep.subr.bf16.mxu0 0
    %116 = vmatpush1.bf16.msra.mxu0 %v89
    %117 = vmatprep.subr.bf16.mxu0 0
    %118 = vmatpush1.bf16.msra.mxu0 %v103
    %119 = vmatprep.subr.bf16.mxu0 0
    %120 = vmatpush1.bf16.msra.mxu0 0
    %121 = vmatprep.subr.bf16.mxu0 0
    %122 = vmatpush1.bf16.msra.mxu0 0
    %123 = vmatprep.subr.bf16.mxu0 0
    %124 = vmatpush1.bf16.msra.mxu0 0
    %125 = vmatprep.subr.bf16.mxu0 0
    %126 = vmatpush1.bf16.msra.mxu0 0
    %127 = vmatprep.subr.bf16.mxu0 0
    %128 = vmatpush1.bf16.msra.mxu0 0
    %129 = vmatprep.subr.bf16.mxu0 0
    %130 = vmatpush1.bf16.msra.mxu0 0
    %131 = vmatprep.subr.bf16.mxu0 0
    %132 = vmatpush1.bf16.msra.mxu0 0
    %133 = vmatprep.subr.bf16.mxu0 0
    %134 = vmatpush1.bf16.msra.mxu0 0
    %135 = vmatprep.subr.bf16.mxu0 0
    %136 = vmatpush1.bf16.msra.mxu0 0
    %137 = vmatprep.mubr.bf16.mxu0 0
    %138 = vmatmul.mubr.bf16.gmra.mrb[0].mxu0 %v99
    %v139 = vpop.f32.mrb[0].mxu0
    %v140 = vadd.f32 %v56, %v139
    %v141 = vpop.f32.mrb[0].mxu0
    %v142 = vpop.f32.mrb[0].mxu0
    %v143 = vpop.f32.mrb[0].mxu0
    %144 = vdwg.mxu0
    %v145 = vmax.f32 %v140, 0.0
    %v146 = vpack.c.bf16 %v145, %v145
    %v147 = vld [vmem:[%s3] sm:$0xf]
    %v148 = vld [vmem:[%s3 + $0x4] sm:$0xf]
    %v149 = vld [vmem:[%s3 + $0x8] sm:$0xf]
    %v150 = vld [vmem:[%s3 + $0xc] sm:$0xf]
    %v151 = vld [vmem:[%s3 + $0x10] sm:$0xf]
    %v152 = vld [vmem:[%s3 + $0x14] sm:$0xf]
    %v153 = vld [vmem:[%s3 + $0x18] sm:$0xf]
    %v154 = vld [vmem:[%s3 + $0x1c] sm:$0xf]
    %v155 = vld [vmem:[%s3 + $0x20] sm:$0xf]
    %v156 = vld [vmem:[%s3 + $0x24] sm:$0xf]
    %v157 = vld [vmem:[%s3 + $0x28] sm:$0xf]
    %v158 = vld [vmem:[%s3 + $0x2c] sm:$0xf]
    %v159 = vld [vmem:[%s3 + $0x30] sm:$0xf]
    %v160 = vld [vmem:[%s3 + $0x34] sm:$0xf]
    %v161 = vld [vmem:[%s3 + $0x38] sm:$0xf]
    %v162 = vld [vmem:[%s3 + $0x3c] sm:$0xf]
    %v163 = vld [vmem:[%s4] sm:$0x1]
    %v165 = vlaneseq
    %v166 = vshrl.u32 %v165, 7
    %v167 = vsub.s32 0, %v166
    %v168 = vrot.slane %v163, %v167
    %v186 = vunpack.c.l.b16 %v147
    %v187 = vunpack.c.l.b16 %v148
    %v188 = vunpack.c.l.b16 %v149
    %v189 = vunpack.c.l.b16 %v150
    %v190 = vunpack.c.l.b16 %v151
    %v191 = vunpack.c.l.b16 %v152
    %v192 = vunpack.c.l.b16 %v153
    %v193 = vunpack.c.l.b16 %v154
    %v194 = vunpack.c.l.b16 %v155
    %v195 = vunpack.c.l.b16 %v156
    %v196 = vunpack.c.l.b16 %v157
    %v197 = vunpack.c.l.b16 %v158
    %v198 = vunpack.c.l.b16 %v159
    %v199 = vunpack.c.l.b16 %v160
    %v200 = vunpack.c.l.b16 %v161
    %v201 = vunpack.c.l.b16 %v162
    %v202 = vpack.c.b16 %v187, %v186
    %v203 = vpack.c.b16 %v189, %v188
    %v204 = vpack.c.b16 %v191, %v190
    %v205 = vpack.c.b16 %v193, %v192
    %v206 = vpack.c.b16 %v195, %v194
    %v207 = vpack.c.b16 %v197, %v196
    %v208 = vpack.c.b16 %v199, %v198
    %v209 = vpack.c.b16 %v201, %v200
    %218 = vmatprep.subr.bf16.mxu0 0
    %219 = vmatpush1.bf16.msra.mxu0 %v202
    %220 = vmatprep.subr.bf16.mxu0 0
    %221 = vmatpush1.bf16.msra.mxu0 %v203
    %222 = vmatprep.subr.bf16.mxu0 0
    %223 = vmatpush1.bf16.msra.mxu0 %v204
    %224 = vmatprep.subr.bf16.mxu0 0
    %225 = vmatpush1.bf16.msra.mxu0 %v205
    %226 = vmatprep.subr.bf16.mxu0 0
    %227 = vmatpush1.bf16.msra.mxu0 %v206
    %228 = vmatprep.subr.bf16.mxu0 0
    %229 = vmatpush1.bf16.msra.mxu0 %v207
    %230 = vmatprep.subr.bf16.mxu0 0
    %231 = vmatpush1.bf16.msra.mxu0 %v208
    %232 = vmatprep.subr.bf16.mxu0 0
    %233 = vmatpush1.bf16.msra.mxu0 %v209
    %234 = vmatprep.subr.bf16.mxu0 0
    %235 = vmatpush1.bf16.msra.mxu0 0
    %236 = vmatprep.subr.bf16.mxu0 0
    %237 = vmatpush1.bf16.msra.mxu0 0
    %238 = vmatprep.subr.bf16.mxu0 0
    %239 = vmatpush1.bf16.msra.mxu0 0
    %240 = vmatprep.subr.bf16.mxu0 0
    %241 = vmatpush1.bf16.msra.mxu0 0
    %242 = vmatprep.subr.bf16.mxu0 0
    %243 = vmatpush1.bf16.msra.mxu0 0
    %244 = vmatprep.subr.bf16.mxu0 0
    %245 = vmatpush1.bf16.msra.mxu0 0
    %246 = vmatprep.subr.bf16.mxu0 0
    %247 = vmatpush1.bf16.msra.mxu0 0
    %248 = vmatprep.subr.bf16.mxu0 0
    %249 = vmatpush1.bf16.msra.mxu0 0
    %250 = vmatprep.mubr.bf16.mxu0 0
    %251 = vmatmul.mubr.bf16.gmra.mrb[0].mxu0 %v146
    %v252 = vpop.f32.mrb[0].mxu0
    %v253 = vadd.f32 %v168, %v252
    %v254 = vpop.f32.mrb[0].mxu0
    %v255 = vpop.f32.mrb[0].mxu0
    %v256 = vpop.f32.mrb[0].mxu0
    %257 = vdwg.mxu0
    %v258 = vmax.f32 %v253, 0.0
    %v259 = vpack.c.bf16 %v258, %v258
    %v260 = vld [vmem:[%s5] sm:$0xf]
    %v261 = vld [vmem:[%s5 + $0x4] sm:$0xf]
    %v262 = vld [vmem:[%s5 + $0x8] sm:$0xf]
    %v263 = vld [vmem:[%s5 + $0xc] sm:$0xf]
    %v264 = vld [vmem:[%s5 + $0x10] sm:$0xf]
    %v265 = vld [vmem:[%s5 + $0x14] sm:$0xf]
    %v266 = vld [vmem:[%s5 + $0x18] sm:$0xf]
    %v267 = vld [vmem:[%s5 + $0x1c] sm:$0xf]
    %v268 = vld [vmem:[%s6] sm:$0x1]
    %v270 = vlaneseq
    %v271 = vshrl.u32 %v270, 7
    %v272 = vsub.s32 0, %v271
    %v273 = vrot.slane %v268, %v272
    %v283 = vunpack.c.l.b16 %v260
    %v284 = vunpack.c.l.b16 %v261
    %v285 = vunpack.c.l.b16 %v262
    %v286 = vunpack.c.l.b16 %v263
    %v287 = vunpack.c.l.b16 %v264
    %v288 = vunpack.c.l.b16 %v265
    %v289 = vunpack.c.l.b16 %v266
    %v290 = vunpack.c.l.b16 %v267
    %v291 = vpack.c.b16 %v284, %v283
    %v292 = vpack.c.b16 %v286, %v285
    %v293 = vpack.c.b16 %v288, %v287
    %v294 = vpack.c.b16 %v290, %v289
    %vm299 = vcmask 523264
    %v301 = vsel %vm299, %v259, 0
    %303 = vmatprep.subr.bf16.mxu0 0
    %304 = vmatpush1.bf16.msra.mxu0 %v291
    %305 = vmatprep.subr.bf16.mxu0 0
    %306 = vmatpush1.bf16.msra.mxu0 %v292
    %307 = vmatprep.subr.bf16.mxu0 0
    %308 = vmatpush1.bf16.msra.mxu0 %v293
    %309 = vmatprep.subr.bf16.mxu0 0
    %310 = vmatpush1.bf16.msra.mxu0 %v294
    %311 = vmatprep.subr.bf16.mxu0 0
    %312 = vmatpush1.bf16.msra.mxu0 0
    %313 = vmatprep.subr.bf16.mxu0 0
    %314 = vmatpush1.bf16.msra.mxu0 0
    %315 = vmatprep.subr.bf16.mxu0 0
    %316 = vmatpush1.bf16.msra.mxu0 0
    %317 = vmatprep.subr.bf16.mxu0 0
    %318 = vmatpush1.bf16.msra.mxu0 0
    %319 = vmatprep.subr.bf16.mxu0 0
    %320 = vmatpush1.bf16.msra.mxu0 0
    %321 = vmatprep.subr.bf16.mxu0 0
    %322 = vmatpush1.bf16.msra.mxu0 0
    %323 = vmatprep.subr.bf16.mxu0 0
    %324 = vmatpush1.bf16.msra.mxu0 0
    %325 = vmatprep.subr.bf16.mxu0 0
    %326 = vmatpush1.bf16.msra.mxu0 0
    %327 = vmatprep.subr.bf16.mxu0 0
    %328 = vmatpush1.bf16.msra.mxu0 0
    %329 = vmatprep.subr.bf16.mxu0 0
    %330 = vmatpush1.bf16.msra.mxu0 0
    %331 = vmatprep.subr.bf16.mxu0 0
    %332 = vmatpush1.bf16.msra.mxu0 0
    %333 = vmatprep.subr.bf16.mxu0 0
    %334 = vmatpush1.bf16.msra.mxu0 0
    %335 = vmatprep.mubr.bf16.mxu0 0
    %336 = vmatmul.mubr.bf16.gmra.mrb[0].mxu0 %v301
    %v337 = vpop.f32.mrb[0].mxu0
    %v338 = vadd.f32 %v273, %v337
    %v339 = vpop.f32.mrb[0].mxu0
    %v340 = vpop.f32.mrb[0].mxu0
    %v341 = vpop.f32.mrb[0].mxu0
    %342 = vdwg.mxu0
    %v343 = vmax.f32 %v338, 0.0
    %v344 = vld [vmem:[%s7] sm:$0xff]
    %vm345 = vcmask 261120
    %v347 = vsel %vm345, %v344, 0
    %v350 = vsel %vm345, %v343, 0
    %352 = vmatprep.subr.mxu0 0.0
    %353 = vmatpush1.xpose.msra.mxu0 %v350
    %354 = vmatprep.subr.mxu0 0.0
    %355 = vmatpush1.xpose.msra.mxu0 0.0
    %356 = vmatprep.subr.mxu0 0.0
    %357 = vmatpush1.xpose.msra.mxu0 0.0
    %358 = vmatprep.subr.mxu0 0.0
    %359 = vmatpush1.xpose.msra.mxu0 0.0
    %360 = vmatprep.subr.mxu0 0.0
    %361 = vmatpush1.xpose.msra.mxu0 0.0
    %362 = vmatprep.subr.mxu0 0.0
    %363 = vmatpush1.xpose.msra.mxu0 0.0
    %364 = vmatprep.subr.mxu0 0.0
    %365 = vmatpush1.xpose.msra.mxu0 0.0
    %366 = vmatprep.subr.mxu0 0.0
    %367 = vmatpush1.xpose.msra.mxu0 0.0
    %368 = vmatprep.subr.mxu0 0.0
    %369 = vmatpush1.xpose.msra.mxu0 0.0
    %370 = vmatprep.subr.mxu0 0.0
    %371 = vmatpush1.xpose.msra.mxu0 0.0
    %372 = vmatprep.subr.mxu0 0.0
    %373 = vmatpush1.xpose.msra.mxu0 0.0
    %374 = vmatprep.subr.mxu0 0.0
    %375 = vmatpush1.xpose.msra.mxu0 0.0
    %376 = vmatprep.subr.mxu0 0.0
    %377 = vmatpush1.xpose.msra.mxu0 0.0
    %378 = vmatprep.subr.mxu0 0.0
    %379 = vmatpush1.xpose.msra.mxu0 0.0
    %380 = vmatprep.subr.mxu0 0.0
    %381 = vmatpush1.xpose.msra.mxu0 0.0
    %382 = vmatprep.subr.mxu0 0.0
    %383 = vmatpush1.xpose.msra.mxu0 0.0
    %384 = vmatprep.subr.mxu0 0.0
    %385 = vmatpush1.xpose.msra.mxu0 0.0
    %386 = vmatprep.subr.mxu0 0.0
    %387 = vmatpush1.xpose.msra.mxu0 0.0
    %388 = vmatprep.subr.mxu0 0.0
    %389 = vmatpush1.xpose.msra.mxu0 0.0
    %390 = vmatprep.subr.mxu0 0.0
    %391 = vmatpush1.xpose.msra.mxu0 0.0
    %392 = vmatprep.subr.mxu0 0.0
    %393 = vmatpush1.xpose.msra.mxu0 0.0
    %394 = vmatprep.subr.mxu0 0.0
    %395 = vmatpush1.xpose.msra.mxu0 0.0
    %396 = vmatprep.subr.mxu0 0.0
    %397 = vmatpush1.xpose.msra.mxu0 0.0
    %398 = vmatprep.subr.mxu0 0.0
    %399 = vmatpush1.xpose.msra.mxu0 0.0
    %400 = vmatprep.subr.mxu0 0.0
    %401 = vmatpush1.xpose.msra.mxu0 0.0
    %402 = vmatprep.subr.mxu0 0.0
    %403 = vmatpush1.xpose.msra.mxu0 0.0
    %404 = vmatprep.subr.mxu0 0.0
    %405 = vmatpush1.xpose.msra.mxu0 0.0
    %406 = vmatprep.subr.mxu0 0.0
    %407 = vmatpush1.xpose.msra.mxu0 0.0
    %408 = vmatprep.subr.mxu0 0.0
    %409 = vmatpush1.xpose.msra.mxu0 0.0
    %410 = vmatprep.subr.mxu0 0.0
    %411 = vmatpush1.xpose.msra.mxu0 0.0
    %412 = vmatprep.subr.mxu0 0.0
    %413 = vmatpush1.xpose.msra.mxu0 0.0
    %414 = vmatprep.subr.mxu0 0.0
    %415 = vmatpush1.xpose.msra.mxu0 0.0
    %416 = vmatprep.mubr.f32.mxu0 0.0
    %417 = vmatmul.mubr.f32.gmra.mrb[0].mxu0 %v347
    %v418 = vpop.f32.mrb[0].mxu0
    %v419 = vadd.f32 0.0, %v418
    %v420 = vpop.f32.mrb[0].mxu0
    %421 = vdwg.mxu0
    %v422 = vld [vmem:[#allocation2] sm:$0x1]
    %424 = vset.pattern.permute.xlu0 0
    %425 = vperm.xlu0 %424, %v422
    %v426 = vpop.permute.xlu0 %425
    %v428 = vlaneseq
    %v429 = vshrl.u32 %v428, 7
    %v430 = vsub.s32 0, %v429
    %v431 = vrot.slane %v426, %v430
    %v432 = vadd.f32 %v419, %v431
    %vm433 = vcmask 57344
    %434 = vst.msk [vmem:[#allocation3] sm:$0x1] %vm433, %v432
    // Predicated region
    $region38: #{tpu_custom_call.1} parent=1 // pred_check
      _
    $region39: #{tpu_custom_call.1} parent=1 // pred_check_branch
      %436 = sbr.rel (0) target = $region41
    $region40: #{tpu_custom_call.1} parent=1 // pred_region
      %s438 = ssub.s32 16, 16
      %439 = vsyncadd [#allocation4], %s438
      %s441 = sshll.u32 [#allocation3], 4
      %s442 = int_to_ptr.vmem [resolvable:$true] %s441
      %444 = dma.vmem_to_hbm [thread:$0]  %s442, 16, %s9, [#allocation4]
    $region41: #{tpu_custom_call.1} parent=1 // pred_fallthru
      _
    // Predicated region
    $region42: #{tpu_custom_call.1} parent=1 // pred_check
      _
    $region43: #{tpu_custom_call.1} parent=1 // pred_check_branch
      %446 = sbr.rel (0) target = $region45
    $region44: #{tpu_custom_call.1} parent=1 // pred_region
      %447 = dma.done [#allocation4], 16
    $region45: #{tpu_custom_call.1} parent=1 // pred_fallthru
      _
    %448 = vsyncpa [#allocation4], 1

</llo_original>
